<compile_context>
chip_gen: v7x
topology: tpu7x:2x2x1
jax: 0.10.0
libtpu: 0.0.40
codegen_flags: <defaults>
</compile_context>

<pallas_src>
import jax
import jax.numpy as jnp
from jax.experimental import pallas as pl
from jax.experimental.pallas import tpu as pltpu


def _round_up(x, m):
    return (x + m - 1) // m * m


def _pairwise_generator_kernel(cls_t_ref, w_ref, b_ref, logits_ref, scores_ref):
    # cls_t_ref: [H, TB]  CLS embeddings, transposed (batch on the lane axis)
    # w_ref:     [H, 1]   classification weight as a column
    # b_ref:     [1, 1]   classification bias
    # logits_ref/scores_ref: [1, TB]  (lane-dense)
    cls_t = cls_t_ref[...].astype(jnp.float32)            # [H, TB]
    w = w_ref[...].astype(jnp.float32)                    # [H, 1]
    b = b_ref[...].astype(jnp.float32)                    # [1, 1]
    # TODO(synk): training-mode dropout (p=hidden_dropout_prob) not applied;
    # eval-mode dropout is the identity, which is what we implement here.
    # Linear(H, 1): per-batch dot product = sublane reduction over H.
    logits = jnp.sum(cls_t * w, axis=0, keepdims=True) + b      # [1, TB] f32
    logits_ref[...] = logits.astype(logits_ref.dtype)
    scores_ref[...] = jax.nn.sigmoid(logits).astype(scores_ref.dtype)


def covid_twitter_pairwise_generator(contextualized_embeddings, weight, bias):
    """Forward pass. Returns (logits, scores), each of shape [B]."""
    B, S, H = contextualized_embeddings.shape

    # Take only the CLS token (seq index 0) outside the kernel, keep native
    # dtype, and put batch on the lane axis: [H, B].
    cls_t = jnp.transpose(contextualized_embeddings[:, 0, :])

    # Pad batch to a lane-friendly size and pick a batch tile.
    max_tb = 1024
    if B <= max_tb:
        b_padded = _round_up(B, 128)
        tb = b_padded
    else:
        tb = max_tb
        b_padded = _round_up(B, tb)
    if b_padded != B:
        cls_t = jnp.pad(cls_t, ((0, 0), (0, b_padded - B)))

    w_col = weight.reshape(H, 1)                  # nn.Linear(H,1).weight -> column
    b2d = bias.reshape(1, 1).astype(jnp.float32)

    grid = (b_padded // tb,)
    logits, scores = pl.pallas_call(
        _pairwise_generator_kernel,
        out_shape=(
            jax.ShapeDtypeStruct((1, b_padded), jnp.float32),
            jax.ShapeDtypeStruct((1, b_padded), jnp.float32),
        ),
        grid=grid,
        in_specs=[
            pl.BlockSpec((H, tb), lambda i: (0, i)),
            pl.BlockSpec((H, 1), lambda i: (0, 0)),
            pl.BlockSpec((1, 1), lambda i: (0, 0)),
        ],
        out_specs=(
            pl.BlockSpec((1, tb), lambda i: (0, i)),
            pl.BlockSpec((1, tb), lambda i: (0, i)),
        ),
        compiler_params=pltpu.CompilerParams(
            dimension_semantics=("parallel",)
        ),
    )(cls_t, w_col, b2d)

    return logits[0, :B], scores[0, :B]


def _init_params(key, hidden_size):
    """Deterministic init matching nn.Linear(hidden_size, 1) shapes.

    PyTorch default: U(-1/sqrt(fan_in), 1/sqrt(fan_in)) for weight and bias.
    """
    kw, kb = jax.random.split(key)
    bound = 1.0 / jnp.sqrt(jnp.float32(hidden_size))
    weight = jax.random.uniform(kw, (1, hidden_size), jnp.float32, -bound, bound)
    bias = jax.random.uniform(kb, (1,), jnp.float32, -bound, bound)
    return weight, bias


if __name__ == "__main__":
    B, S, H = 2, 8, 32  # small shapes: batch=2, seq=8, hidden=32

    key = jax.random.PRNGKey(0)
    k_emb, k_params = jax.random.split(key)
    contextualized_embeddings = jax.random.normal(k_emb, (B, S, H), jnp.float32)
    weight, bias = _init_params(k_params, H)

    logits, scores = covid_twitter_pairwise_generator(
        contextualized_embeddings, weight, bias
    )
    jax.block_until_ready((logits, scores))

    # Reference check in plain JAX (same math as the PyTorch module, eval mode).
    cls = contextualized_embeddings[:, 0]
    ref_logits = (cls @ weight.T)[:, 0] + bias[0]
    ref_scores = jax.nn.sigmoid(ref_logits)
    assert logits.shape == (B,) and scores.shape == (B,)
    assert jnp.allclose(logits, ref_logits, atol=1e-5, rtol=1e-5)
    assert jnp.allclose(scores, ref_scores, atol=1e-5, rtol=1e-5)

    print("KERNEL_OK")
</pallas_src>

<mosaic_0001>
module attributes {stable_mosaic.version = 11 : i64} {
  func.func @_pairwise_generator_kernel(%arg0: i32, %arg1: memref<32x128xf32, #tpu.memory_space<vmem>>, %arg2: memref<32x1xf32, #tpu.memory_space<vmem>>, %arg3: memref<1x1xf32, #tpu.memory_space<vmem>>, %arg4: memref<1x128xf32, #tpu.memory_space<vmem>>, %arg5: memref<1x128xf32, #tpu.memory_space<vmem>>) attributes {dimension_semantics = [#tpu.dimension_semantics<parallel>], iteration_bounds = array<i64: 1>, scalar_prefetch = 0 : i64, scratch_operands = 0 : i64, tpu.core_type = #tpu.core_type<tc>, window_params = [{transform_indices = @transform_0, window_bounds = array<i64: 32, 128>}, {pipeline_mode = #tpu.pipeline_mode<synchronous>, transform_indices = @transform_1, window_bounds = array<i64: 32, 1>}, {pipeline_mode = #tpu.pipeline_mode<synchronous>, transform_indices = @transform_2, window_bounds = array<i64: 1, 1>}, {transform_indices = @transform_3, window_bounds = array<i64: 1, 128>}, {transform_indices = @transform_4, window_bounds = array<i64: 1, 128>}]} {
    %c0 = arith.constant 0 : index
    %c0_0 = arith.constant 0 : index
    %0 = vector.load %arg1[%c0, %c0_0] : memref<32x128xf32, #tpu.memory_space<vmem>>, vector<32x128xf32>
    %c0_1 = arith.constant 0 : index
    %c0_2 = arith.constant 0 : index
    %1 = vector.load %arg2[%c0_1, %c0_2] : memref<32x1xf32, #tpu.memory_space<vmem>>, vector<32x1xf32>
    %c0_3 = arith.constant 0 : index
    %c0_4 = arith.constant 0 : index
    %2 = vector.load %arg3[%c0_3, %c0_4] : memref<1x1xf32, #tpu.memory_space<vmem>>, vector<1x1xf32>
    %3 = vector.broadcast %1 : vector<32x1xf32> to vector<32x128xf32>
    %4 = arith.mulf %0, %3 : vector<32x128xf32>
    %cst = arith.constant dense<0.000000e+00> : vector<128xf32>
    %5 = vector.multi_reduction <add>, %4, %cst [0] : vector<32x128xf32> to vector<128xf32>
    %6 = vector.shape_cast %5 : vector<128xf32> to vector<1x128xf32>
    %7 = vector.broadcast %2 : vector<1x1xf32> to vector<1x128xf32>
    %8 = arith.addf %6, %7 : vector<1x128xf32>
    %c0_5 = arith.constant 0 : index
    %c0_6 = arith.constant 0 : index
    %9 = vector.load %arg4[%c0_5, %c0_6] : memref<1x128xf32, #tpu.memory_space<vmem>>, vector<1x128xf32>
    tpu.vector_store %arg4[%c0_5, %c0_6], %8 {strides = array<i32>} : memref<1x128xf32, #tpu.memory_space<vmem>>, vector<1x128xf32>,
    %10 = arith.negf %8 : vector<1x128xf32>
    %11 = math.exp %10 : vector<1x128xf32>
    %cst_7 = arith.constant 1.000000e+00 : f32
    %12 = vector.broadcast %cst_7 : f32 to vector<1x128xf32>
    %13 = arith.addf %12, %11 : vector<1x128xf32>
    %14 = arith.divf %12, %13 : vector<1x128xf32>
    %c0_8 = arith.constant 0 : index
    %c0_9 = arith.constant 0 : index
    %15 = vector.load %arg5[%c0_8, %c0_9] : memref<1x128xf32, #tpu.memory_space<vmem>>, vector<1x128xf32>
    tpu.vector_store %arg5[%c0_8, %c0_9], %14 {strides = array<i32>} : memref<1x128xf32, #tpu.memory_space<vmem>>, vector<1x128xf32>,
    return
  }
  func.func @transform_0(%arg0: i32) -> (i32, i32) {
    %c0_i32 = arith.constant 0 : i32
    %c0_i32_0 = arith.constant 0 : i32
    return %c0_i32, %arg0 : i32, i32
  }
  func.func @transform_1(%arg0: i32) -> (i32, i32) {
    %c0_i32 = arith.constant 0 : i32
    %c0_i32_0 = arith.constant 0 : i32
    %c0_i32_1 = arith.constant 0 : i32
    return %c0_i32, %c0_i32_0 : i32, i32
  }
  func.func @transform_2(%arg0: i32) -> (i32, i32) {
    %c0_i32 = arith.constant 0 : i32
    %c0_i32_0 = arith.constant 0 : i32
    %c0_i32_1 = arith.constant 0 : i32
    return %c0_i32, %c0_i32_0 : i32, i32
  }
  func.func @transform_3(%arg0: i32) -> (i32, i32) {
    %c0_i32 = arith.constant 0 : i32
    %c0_i32_0 = arith.constant 0 : i32
    return %c0_i32, %arg0 : i32, i32
  }
  func.func @transform_4(%arg0: i32) -> (i32, i32) {
    %c0_i32 = arith.constant 0 : i32
    %c0_i32_0 = arith.constant 0 : i32
    return %c0_i32, %arg0 : i32, i32
  }
}

</mosaic_0001>

<llo_original>
// kernel: tpu_custom_call.1
$region0: #{tpu_custom_call.1}
  #allocation0 [shape = 'u32[]', space=smem, size = 0x4, offset = 0x4, fixed_abs, tag = 'smem constant byte address 0x4 - core index']
  #allocation1 [shape = 'u32[144,128]{1,0:T(1,128)}', space=vmem, size = 0x12000, scoped, tag = 'internal scratch']
  #allocation2 [shape = 'f32[1,1]{1,0:T(1,128)S(1)}', space=vmem, size = 0x200, scoped, tag = 'scoped memory for tpu_custom_call.1']
  %s0 = inlined_call_operand.vmem [shape: f32[32,128], index: 0, kind: input, shape index: {}]
  %s1 = inlined_call_operand.vmem [shape: f32[32,1], index: 1, kind: input, shape index: {}]
  %s2 = inlined_call_operand.<no memory space> [shape: f32[1,1], index: 2, kind: input, shape index: {}]
  %s3 = inlined_call_operand.hbm [shape: f32[1,128], index: 3, kind: output, shape index: {0}]
  %s4 = inlined_call_operand.hbm [shape: f32[1,128], index: 4, kind: output, shape index: {1}]
  %5 = xla_tuple %s3, %s4
  %s6 = sld [smem:[#allocation0]]
  $region30: #{tpu_custom_call.1} parent=0
    _
  %s8 = ssub.s32 1, %s6
  %s9 = scalar_select 0, %s8, %s6
  %v10 = vstv %s2
  %11 = vst [vmem:[#allocation2] sm:$0x1] %v10
  $region1: #{tpu_custom_call.1} parent=0
    #allocation3 [shape = 'u8[512]{0}', space=vmem, size = 0x400, scoped, tag = 'output window, operand 0, single buffered']
    #allocation4 [shape = 's32[1]{0}', space=sflag, size = 0x4, scoped, tag = 'scoped memory for tpu_custom_call.1']
    #allocation5 [shape = 'u8[512]{0}', space=vmem, size = 0x400, scoped, tag = 'output window, operand 1, single buffered']
    #allocation6 [shape = 's32[1]{0}', space=sflag, size = 0x4, scoped, tag = 'scoped memory for tpu_custom_call.1']
    %12 = vsyncpa [#allocation4], 0
    %13 = vsyncpa [#allocation6], 0
    // Predicated region
    $region2: #{tpu_custom_call.1} parent=1 // pred_check
      _
    $region3: #{tpu_custom_call.1} parent=1 // pred_check_branch
      %15 = sbr.rel (0) target = $region5
    $region4: #{tpu_custom_call.1} parent=1 // pred_region
      _
    $region5: #{tpu_custom_call.1} parent=1 // pred_fallthru
      _
    // Predicated region
    $region6: #{tpu_custom_call.1} parent=1 // pred_check
      _
    $region7: #{tpu_custom_call.1} parent=1 // pred_check_branch
      %17 = sbr.rel (0) target = $region9
    $region8: #{tpu_custom_call.1} parent=1 // pred_region
      _
    $region9: #{tpu_custom_call.1} parent=1 // pred_fallthru
      _
    // Predicated region
    $region10: #{tpu_custom_call.1} parent=1 // pred_check
      _
    $region11: #{tpu_custom_call.1} parent=1 // pred_check_branch
      %19 = sbr.rel (0) target = $region13
    $region12: #{tpu_custom_call.1} parent=1 // pred_region
      _
    $region13: #{tpu_custom_call.1} parent=1 // pred_fallthru
      _
    %v20 = vld [vmem:[%s0] sm:$0xff]
    %v21 = vld [vmem:[%s0 + $0x8] sm:$0xff]
    %v22 = vld [vmem:[%s0 + $0x10] sm:$0xff]
    %v23 = vld [vmem:[%s0 + $0x18] sm:$0xff]
    %v24 = vld [vmem:[%s1] sm:$0xff]
    %v25 = vld [vmem:[%s1 + $0x8] sm:$0xff]
    %v26 = vld [vmem:[%s1 + $0x10] sm:$0xff]
    %v27 = vld [vmem:[%s1 + $0x18] sm:$0xff]
    %v28 = vld [vmem:[#allocation2] sm:$0x1]
    %30 = vset.pattern.permute.xlu0 0
    %31 = vperm.xlu0 %30, %v24
    %v32 = vpop.permute.xlu0 %31
    %35 = vset.pattern.permute.xlu0 0
    %36 = vperm.xlu0 %35, %v25
    %v37 = vpop.permute.xlu0 %36
    %40 = vset.pattern.permute.xlu0 0
    %41 = vperm.xlu0 %40, %v26
    %v42 = vpop.permute.xlu0 %41
    %45 = vset.pattern.permute.xlu0 0
    %46 = vperm.xlu0 %45, %v27
    %v47 = vpop.permute.xlu0 %46
    %v49 = vmul.f32 %v20, %v32
    %v50 = vmul.f32 %v21, %v37
    %v51 = vmul.f32 %v22, %v42
    %v52 = vmul.f32 %v23, %v47
    %v53 = vadd.f32 %v49, %v50
    %v54 = vadd.f32 %v53, %v51
    %v55 = vadd.f32 %v54, %v52
    %v56 = vrot.slane %v55, 4
    %v57 = vadd.f32 %v55, %v56
    %v58 = vrot.slane %v57, 2
    %v59 = vadd.f32 %v57, %v58
    %v60 = vrot.slane %v59, 1
    %v61 = vadd.f32 %v59, %v60
    %63 = vset.pattern.permute.xlu0 0
    %64 = vperm.xlu0 %63, %v28
    %v65 = vpop.permute.xlu0 %64
    %v67 = vlaneseq
    %v68 = vshrl.u32 %v67, 7
    %v69 = vsub.s32 0, %v68
    %v70 = vrot.slane %v65, %v69
    %v71 = vadd.f32 %v61, %v70
    %72 = vst [vmem:[#allocation3] sm:$0x1] %v71
    %v73 = vxor.u32 %v71, 2147483648
    %v74 = vmul.f32 %v73, 1.442695
    %v75 = vpow.pop %v74
    %v76 = vadd.f32 %v75, 1.0
    %v77 = vrcp.pop %v76
    %v78 = vmul.f32 1.0, %v77
    %79 = vst [vmem:[#allocation5] sm:$0x1] %v78
    // Predicated region
    $region14: #{tpu_custom_call.1} parent=1 // pred_check
      _
    $region15: #{tpu_custom_call.1} parent=1 // pred_check_branch
      %81 = sbr.rel (0) target = $region17
    $region16: #{tpu_custom_call.1} parent=1 // pred_region
      %s83 = ssub.s32 16, 16
      %84 = vsyncadd [#allocation4], %s83
      %s86 = sshll.u32 [#allocation3], 4
      %s87 = int_to_ptr.vmem [resolvable:$true] %s86
      %89 = dma.vmem_to_hbm [thread:$0]  %s87, 16, %s3, [#allocation4]
    $region17: #{tpu_custom_call.1} parent=1 // pred_fallthru
      _
    // Predicated region
    $region18: #{tpu_custom_call.1} parent=1 // pred_check
      _
    $region19: #{tpu_custom_call.1} parent=1 // pred_check_branch
      %91 = sbr.rel (0) target = $region21
    $region20: #{tpu_custom_call.1} parent=1 // pred_region
      %s93 = ssub.s32 16, 16
      %94 = vsyncadd [#allocation6], %s93
      %s96 = sshll.u32 [#allocation5], 4
      %s97 = int_to_ptr.vmem [resolvable:$true] %s96
      %99 = dma.vmem_to_hbm [thread:$0]  %s97, 16, %s4, [#allocation6]
    $region21: #{tpu_custom_call.1} parent=1 // pred_fallthru
      _
    // Predicated region
    $region22: #{tpu_custom_call.1} parent=1 // pred_check
      _
    $region23: #{tpu_custom_call.1} parent=1 // pred_check_branch
      %101 = sbr.rel (0) target = $region25
    $region24: #{tpu_custom_call.1} parent=1 // pred_region
      %102 = dma.done [#allocation4], 16
    $region25: #{tpu_custom_call.1} parent=1 // pred_fallthru
      _
    // Predicated region
    $region26: #{tpu_custom_call.1} parent=1 // pred_check
      _
    $region27: #{tpu_custom_call.1} parent=1 // pred_check_branch
      %104 = sbr.rel (0) target = $region29
    $region28: #{tpu_custom_call.1} parent=1 // pred_region
      %105 = dma.done [#allocation6], 16
    $region29: #{tpu_custom_call.1} parent=1 // pred_fallthru
      _
    %106 = vsyncpa [#allocation4], 1
    %107 = vsyncpa [#allocation6], 1

</llo_original>
